<compile_context>
chip_gen: v7x
topology: tpu7x:2x2x1
jax: 0.10.0
libtpu: 0.0.40
codegen_flags: <defaults>
</compile_context>

<pallas_src>
import functools

import jax
import jax.numpy as jnp
from jax.experimental import pallas as pl
from jax.experimental.pallas import tpu as pltpu


def _round_up(x, m):
    return ((x + m - 1) // m) * m


# ---------------------------------------------------------------------------
# Kernel: one batch tile of the full Actor forward.
#   s_ref  : (TB, state_dim)           states (natural layout, no feature pad)
#   wp_ref : (SD_pad + 2*C, C)         packed [W1; W2; W3], zero-padded
#   bp_ref : (8, C)  f32               rows 0,1,2 = b1, b2, b3
#   out_ref: (TB, C)                   lane-dense probabilities (cols >= A ~ 0)
#
# Packing invariants (enforced by the wrapper -- do not break):
#   * W1/W2 padded cols and b1/b2 padded lanes are exactly 0, so the padded
#     hidden lanes of h1/h2 stay exactly tanh(0) = 0.
#   * W3 padded cols are exactly 0 and b3 padded lanes are -1e30, so padded
#     logit lanes are exactly -1e30 and vanish in the softmax with no mask.
# ---------------------------------------------------------------------------
def actor_kernel(s_ref, wp_ref, bp_ref, out_ref, *, state_dim, sd_pad, c):
    s = s_ref[...]                                   # (TB, state_dim)

    # Static row slices of the packed weight buffer (W2/W3 offsets 8-aligned).
    w1 = wp_ref[0:state_dim, :]                      # (state_dim, C)
    w2 = wp_ref[sd_pad:sd_pad + c, :]                # (C, C)
    w3 = wp_ref[sd_pad + c:sd_pad + 2 * c, :]        # (C, C)

    bp = bp_ref[...]                                 # single (8, C) load
    b1 = bp[0:1, :]
    b2 = bp[1:2, :]
    b3 = bp[2:3, :]                                  # carries -1e30 softmax mask

    # fc1 -> tanh   (f32 accumulate regardless of input dtype)
    h1 = jnp.tanh(jnp.dot(s, w1, preferred_element_type=jnp.float32) + b1)
    # fc2 -> tanh
    h2 = jnp.tanh(
        jnp.dot(h1.astype(w2.dtype), w2, preferred_element_type=jnp.float32) + b2)
    # fc3  (padded lanes land at exactly -1e30 via b3 -- no in-kernel mask)
    logits = jnp.dot(h2.astype(w3.dtype), w3,
                     preferred_element_type=jnp.float32) + b3

    # Numerically stable softmax over the action lanes.
    m = jnp.max(logits, axis=-1, keepdims=True)
    e = jnp.exp(logits - m)
    denom = jnp.sum(e, axis=-1, keepdims=True)
    # Exact reciprocal: approx=True (EUP vrcp) exceeded the 1e-5 tolerance.
    out_ref[...] = (e * pl.reciprocal(denom, approx=False)).astype(out_ref.dtype)


# ---------------------------------------------------------------------------
# Wrapper: packs operands, sets up the batch grid, slices the result.
# ---------------------------------------------------------------------------
def actor_forward(s, w1, b1, w2, b2, w3, b3, *, block_b=512,
                  input_dtype=jnp.float32):
    B, state_dim = s.shape
    hidden = w1.shape[1]
    action_dim = w3.shape[1]

    C = _round_up(max(hidden, action_dim, 128), 128)   # lane-dense width
    SD_pad = _round_up(state_dim, 8)                   # W2/W3 packing offset

    f32 = jnp.float32

    # Batch tile: multiple of 8, capped by block_b, shrunk so the grid has
    # >= 2 steps whenever possible (v7x two-TC split + DMA pipelining).
    B8 = _round_up(B, 8)
    TB = min(block_b, B8)
    if B8 >= 16 and B8 // TB < 2:
        TB = _round_up(pl.cdiv(B8, 2), 8)
    B_pad = _round_up(B, TB)

    # States: zero-copy in the common case; only pad the batch dim if needed.
    s_in = s.astype(input_dtype)
    if B_pad != B:
        s_in = jnp.zeros((B_pad, state_dim), input_dtype).at[:B, :].set(s_in)

    # Packed, zero-padded weights [W1; W2; W3] -> one grid-invariant DMA.
    w_pack = jnp.zeros((SD_pad + 2 * C, C), f32)
    w_pack = w_pack.at[:state_dim, :hidden].set(w1.astype(f32))
    w_pack = w_pack.at[SD_pad:SD_pad + hidden, :hidden].set(w2.astype(f32))
    w_pack = w_pack.at[SD_pad + C:SD_pad + C + hidden, :action_dim].set(w3.astype(f32))
    w_pack = w_pack.astype(input_dtype)

    # Packed biases (kept f32). Row 2's padded action lanes carry the softmax
    # mask: -1e30 baked here instead of an in-kernel iota+select.
    b_pack = jnp.zeros((8, C), f32)
    b_pack = b_pack.at[0, :hidden].set(b1.reshape(-1).astype(f32))
    b_pack = b_pack.at[1, :hidden].set(b2.reshape(-1).astype(f32))
    b_pack = b_pack.at[2, :action_dim].set(b3.reshape(-1).astype(f32))
    b_pack = b_pack.at[2, action_dim:].set(-1e30)

    kernel = functools.partial(actor_kernel, state_dim=state_dim,
                               sd_pad=SD_pad, c=C)

    out_padded = pl.pallas_call(
        kernel,
        out_shape=jax.ShapeDtypeStruct((B_pad, C), f32),
        grid_spec=pltpu.PrefetchScalarGridSpec(
            num_scalar_prefetch=0,
            grid=(B_pad // TB,),
            in_specs=[
                pl.BlockSpec((TB, state_dim), lambda i: (i, 0)),
                # Grid-invariant blocks: DMA'd once per call.
                pl.BlockSpec((SD_pad + 2 * C, C), lambda i: (0, 0)),
                pl.BlockSpec((8, C), lambda i: (0, 0)),
            ],
            out_specs=pl.BlockSpec((TB, C), lambda i: (i, 0)),
        ),
        compiler_params=pltpu.CompilerParams(
            dimension_semantics=("parallel",),
        ),
        cost_estimate=pl.CostEstimate(
            flops=2 * B_pad * (state_dim * C + 2 * C * C),
            transcendentals=3 * B_pad * C,
            bytes_accessed=(s_in.size * s_in.dtype.itemsize
                            + w_pack.size * w_pack.dtype.itemsize
                            + b_pack.size * 4
                            + B_pad * C * 4),
        ),
    )(s_in, w_pack, b_pack)

    return out_padded[:B, :action_dim]


# ---------------------------------------------------------------------------
# Deterministic parameter init (mimics nn.init.orthogonal_ + zero bias).
# ---------------------------------------------------------------------------
def orthogonal_init(key, out_dim, in_dim, gain=1.0):
    a = jax.random.normal(key, (out_dim, in_dim), dtype=jnp.float32)
    flat = a if out_dim >= in_dim else a.T
    q, r = jnp.linalg.qr(flat)
    d = jnp.diagonal(r)
    q = q * jnp.where(d == 0, 1.0, jnp.sign(d))   # copysign-like (0 -> +1)
    if out_dim < in_dim:
        q = q.T
    w = gain * q[:out_dim, :in_dim]               # torch layout (out, in)
    return w.T.astype(jnp.float32)                # kernel layout (in, out)


if __name__ == "__main__":
    # Small shapes consistent with Actor.forward: s is [batch, state_dim].
    batch = 64
    state_dim = 16
    hidden_width = 32
    action_dim = 4

    key = jax.random.PRNGKey(0)
    k_s, k1, k2, k3 = jax.random.split(key, 4)

    s = jax.random.normal(k_s, (batch, state_dim), dtype=jnp.float32)

    w1 = orthogonal_init(k1, hidden_width, state_dim, gain=1.0)
    b1 = jnp.zeros((1, hidden_width), dtype=jnp.float32)
    w2 = orthogonal_init(k2, hidden_width, hidden_width, gain=1.0)
    b2 = jnp.zeros((1, hidden_width), dtype=jnp.float32)
    w3 = orthogonal_init(k3, action_dim, hidden_width, gain=0.01)
    b3 = jnp.zeros((1, action_dim), dtype=jnp.float32)

    # Defaults give TB=32 -> grid=(2,), exercising the multi-step batch grid.
    a_prob = actor_forward(s, w1, b1, w2, b2, w3, b3)
    a_prob = jax.block_until_ready(a_prob)

    # Reference check in plain JAX (same math as the PyTorch forward).
    h1 = jnp.tanh(s @ w1 + b1)
    h2 = jnp.tanh(h1 @ w2 + b2)
    ref = jax.nn.softmax(h2 @ w3 + b3, axis=1)

    assert a_prob.shape == (batch, action_dim)
    assert jnp.allclose(a_prob, ref, atol=1e-5, rtol=1e-5)
    assert jnp.allclose(jnp.sum(a_prob, axis=1), 1.0, atol=1e-5)

    print("KERNEL_OK")
</pallas_src>

<mosaic_0001>
module attributes {stable_mosaic.version = 11 : i64} {
  func.func @actor_kernel(%arg0: i32, %arg1: memref<32x16xf32, #tpu.memory_space<vmem>>, %arg2: memref<272x128xf32, #tpu.memory_space<vmem>>, %arg3: memref<8x128xf32, #tpu.memory_space<vmem>>, %arg4: memref<32x128xf32, #tpu.memory_space<vmem>>) attributes {dimension_semantics = [#tpu.dimension_semantics<parallel>], iteration_bounds = array<i64: 2>, scalar_prefetch = 0 : i64, scratch_operands = 0 : i64, tpu.core_type = #tpu.core_type<tc>, window_params = [{transform_indices = @transform_0, window_bounds = array<i64: 32, 16>}, {pipeline_mode = #tpu.pipeline_mode<synchronous>, transform_indices = @transform_1, window_bounds = array<i64: 272, 128>}, {pipeline_mode = #tpu.pipeline_mode<synchronous>, transform_indices = @transform_2, window_bounds = array<i64: 8, 128>}, {transform_indices = @transform_3, window_bounds = array<i64: 32, 128>}]} {
    %c0 = arith.constant 0 : index
    %c0_0 = arith.constant 0 : index
    %0 = vector.load %arg1[%c0, %c0_0] : memref<32x16xf32, #tpu.memory_space<vmem>>, vector<32x16xf32>
    %c0_1 = arith.constant 0 : index
    %c0_2 = arith.constant 0 : index
    %1 = vector.load %arg2[%c0_1, %c0_2] : memref<272x128xf32, #tpu.memory_space<vmem>>, vector<16x128xf32>
    %c16 = arith.constant 16 : index
    %c0_3 = arith.constant 0 : index
    %2 = vector.load %arg2[%c16, %c0_3] : memref<272x128xf32, #tpu.memory_space<vmem>>, vector<128x128xf32>
    %c144 = arith.constant 144 : index
    %c0_4 = arith.constant 0 : index
    %3 = vector.load %arg2[%c144, %c0_4] : memref<272x128xf32, #tpu.memory_space<vmem>>, vector<128x128xf32>
    %c0_5 = arith.constant 0 : index
    %c0_6 = arith.constant 0 : index
    %4 = vector.load %arg3[%c0_5, %c0_6] : memref<8x128xf32, #tpu.memory_space<vmem>>, vector<8x128xf32>
    %5 = vector.extract_strided_slice %4 {offsets = [0, 0], sizes = [1, 128], strides = [1, 1]} : vector<8x128xf32> to vector<1x128xf32>
    %6 = vector.extract_strided_slice %4 {offsets = [1, 0], sizes = [1, 128], strides = [1, 1]} : vector<8x128xf32> to vector<1x128xf32>
    %7 = vector.extract_strided_slice %4 {offsets = [2, 0], sizes = [1, 128], strides = [1, 1]} : vector<8x128xf32> to vector<1x128xf32>
    %cst = arith.constant dense<0.000000e+00> : vector<32x128xf32>
    %8 = tpu.matmul %0, %1, %cst {dimension_numbers = #tpu.dot_dimension_numbers<[1], [0], [0], [1], [0, 0, 1, 1], [], []>} : vector<32x16xf32>, vector<16x128xf32>, vector<32x128xf32> -> vector<32x128xf32>
    %9 = vector.broadcast %5 : vector<1x128xf32> to vector<32x128xf32>
    %10 = arith.addf %8, %9 : vector<32x128xf32>
    %11 = math.tanh %10 : vector<32x128xf32>
    %cst_7 = arith.constant dense<0.000000e+00> : vector<32x128xf32>
    %12 = tpu.matmul %11, %2, %cst_7 {dimension_numbers = #tpu.dot_dimension_numbers<[1], [0], [0], [1], [0, 0, 1, 1], [], []>} : vector<32x128xf32>, vector<128x128xf32>, vector<32x128xf32> -> vector<32x128xf32>
    %13 = vector.broadcast %6 : vector<1x128xf32> to vector<32x128xf32>
    %14 = arith.addf %12, %13 : vector<32x128xf32>
    %15 = math.tanh %14 : vector<32x128xf32>
    %cst_8 = arith.constant dense<0.000000e+00> : vector<32x128xf32>
    %16 = tpu.matmul %15, %3, %cst_8 {dimension_numbers = #tpu.dot_dimension_numbers<[1], [0], [0], [1], [0, 0, 1, 1], [], []>} : vector<32x128xf32>, vector<128x128xf32>, vector<32x128xf32> -> vector<32x128xf32>
    %17 = vector.broadcast %7 : vector<1x128xf32> to vector<32x128xf32>
    %18 = arith.addf %16, %17 : vector<32x128xf32>
    %cst_9 = arith.constant dense<0xFF800000> : vector<32xf32>
    %19 = vector.multi_reduction <maximumf>, %18, %cst_9 [1] : vector<32x128xf32> to vector<32xf32>
    %20 = vector.shape_cast %19 : vector<32xf32> to vector<32x1xf32>
    %21 = vector.broadcast %20 : vector<32x1xf32> to vector<32x128xf32>
    %22 = arith.subf %18, %21 : vector<32x128xf32>
    %23 = math.exp %22 : vector<32x128xf32>
    %cst_10 = arith.constant dense<0.000000e+00> : vector<32xf32>
    %24 = vector.multi_reduction <add>, %23, %cst_10 [1] : vector<32x128xf32> to vector<32xf32>
    %25 = vector.shape_cast %24 : vector<32xf32> to vector<32x1xf32>
    %26 = tpu.reciprocal %25 : vector<32x1xf32> -> vector<32x1xf32>
    %27 = vector.broadcast %26 : vector<32x1xf32> to vector<32x128xf32>
    %28 = arith.mulf %23, %27 : vector<32x128xf32>
    %c0_11 = arith.constant 0 : index
    %c0_12 = arith.constant 0 : index
    %29 = vector.load %arg4[%c0_11, %c0_12] : memref<32x128xf32, #tpu.memory_space<vmem>>, vector<32x128xf32>
    tpu.vector_store %arg4[%c0_11, %c0_12], %28 {strides = array<i32>} : memref<32x128xf32, #tpu.memory_space<vmem>>, vector<32x128xf32>,
    return
  }
  func.func @transform_0(%arg0: i32) -> (i32, i32) {
    %c0_i32 = arith.constant 0 : i32
    %c0_i32_0 = arith.constant 0 : i32
    return %arg0, %c0_i32 : i32, i32
  }
  func.func @transform_1(%arg0: i32) -> (i32, i32) {
    %c0_i32 = arith.constant 0 : i32
    %c0_i32_0 = arith.constant 0 : i32
    %c0_i32_1 = arith.constant 0 : i32
    return %c0_i32, %c0_i32_0 : i32, i32
  }
  func.func @transform_2(%arg0: i32) -> (i32, i32) {
    %c0_i32 = arith.constant 0 : i32
    %c0_i32_0 = arith.constant 0 : i32
    %c0_i32_1 = arith.constant 0 : i32
    return %c0_i32, %c0_i32_0 : i32, i32
  }
  func.func @transform_3(%arg0: i32) -> (i32, i32) {
    %c0_i32 = arith.constant 0 : i32
    %c0_i32_0 = arith.constant 0 : i32
    return %arg0, %c0_i32 : i32, i32
  }
}

</mosaic_0001>

<llo_original>
// kernel: tpu_custom_call.1
$region0: #{tpu_custom_call.1}
  #allocation0 [shape = 'u32[]', space=smem, size = 0x4, offset = 0x4, fixed_abs, tag = 'smem constant byte address 0x4 - core index']
  #allocation1 [shape = 'u32[144,128]{1,0:T(1,128)}', space=vmem, size = 0x12000, scoped, tag = 'internal scratch']
  %s0 = inlined_call_operand.vmem [shape: f32[64,16], index: 0, kind: input, shape index: {}]
  %s1 = inlined_call_operand.hbm [shape: f32[272,128], index: 1, kind: input, shape index: {}]
  %s2 = inlined_call_operand.vmem [shape: f32[8,128], index: 2, kind: input, shape index: {}]
  %s3 = inlined_call_operand.hbm [shape: f32[64,128], index: 3, kind: output, shape index: {}]
  %s4 = sld [smem:[#allocation0]]
  $region49: #{tpu_custom_call.1} parent=0
    _
  %s6 = ssub.s32 1, %s4
  %s7 = scalar_select 0, %s6, %s4
  $region1: #{tpu_custom_call.1} parent=0
    #allocation2 [shape = 'u8[139264]{0}', space=vmem, size = 0x22000, scoped, tag = 'input window, operand 1, single buffered']
    #allocation3 [shape = 's32[2]{0}', space=sflag, size = 0x8, scoped, tag = 'scoped memory for tpu_custom_call.1']
    #allocation4 [shape = 's32[2]{0}', space=sflag, size = 0x8, scoped, tag = 'scoped memory for tpu_custom_call.1']
    #allocation5 [shape = 'u8[32768]{0}', space=vmem, size = 0x8000, scoped, tag = 'output window, operand 0']
    %8 = vsyncpa [#allocation3], 0
    %9 = vsyncpa [#allocation4], 0
    %s10 = scalar_lea.sflag [#allocation4], 1
    %11 = vsyncpa %s10, 0
    loop: start=0, step=1, limit=4
    $region2: #{tpu_custom_call.1} parent=1 // loop_pre_header
      _
    $region3: #{tpu_custom_call.1} parent=1 // loop_header
      %s13 = sphi 0, %s17
      %p14 = scmp.ge.s32.totalorder %s13, 4
      %s23 = sphi 0, %s25
      %s26 = sphi 0, %s23
      %s27 = sphi 0, %s26
      %s43 = sphi 0, %s27
      %s47 = sphi 0, %s47
      %s49 = sphi 0, %s47
      %s50 = sphi 0, %s49
      %s64 = sphi 0, %s50
      %s68 = sphi 0, %s68
      %s70 = sphi 0, %s68
      %s71 = sphi 0, %s70
      %s85 = sphi 0, %s71
      %s91 = sphi 0, %s93
      %s94 = sphi 0, %s91
      %s95 = sphi 0, %s94
      %s111 = sphi 0, %s95
    $region4: #{tpu_custom_call.1} parent=1 // loop_header_branch
      %16 = sbr.rel (%p14) target = $region8
    $region5: #{tpu_custom_call.1} parent=1 // loop_body
      %s18 = ssub.s32 %s13, 1
      %s19 = ssub.s32 %s13, 2
      %s20 = sadd.s32 %s13, 1
      %s21 = ssub.s32 %s13, %s20
      %p22 = scmp.eq.s32.totalorder %s21, 0
      %s24 = sadd.s32 %s23, 1
      %s25 = scalar_select %p22, %s23, %s24
      %p28 = pneg %p22
      %p29 = scmp.eq.s32.totalorder %s13, 1
      %p30 = por %p28, %p29
      %p31 = scmp.ne.s32.totalorder %s23, %s26
      %p32 = scmp.eq.s32.totalorder %s13, 0
      %p33 = por %p31, %p32
      %p34 = scmp.ne.s32.totalorder %s23, %s26
      %p35 = scmp.eq.s32.totalorder %s18, 1
      %p36 = por %p34, %p35
      %p37 = scmp.ne.s32.totalorder %s26, %s27
      %p38 = scmp.eq.s32.totalorder %s18, 0
      %p39 = por %p37, %p38
      %p40 = scmp.ne.s32.totalorder %s26, %s27
      %p41 = scmp.eq.s32.totalorder %s19, 1
      %p42 = por %p40, %p41
      %p44 = scmp.ne.s32.totalorder %s27, %s43
      %p45 = scmp.eq.s32.totalorder %s19, 0
      %p46 = por %p44, %p45
      %s48 = sadd.s32 %s47, 1
      %p51 = scmp.eq.s32.totalorder %s13, 1
      %p52 = scmp.ne.s32.totalorder %s47, %s49
      %p53 = scmp.eq.s32.totalorder %s13, 0
      %p54 = por %p52, %p53
      %p55 = scmp.ne.s32.totalorder %s47, %s49
      %p56 = scmp.eq.s32.totalorder %s18, 1
      %p57 = por %p55, %p56
      %p58 = scmp.ne.s32.totalorder %s49, %s50
      %p59 = scmp.eq.s32.totalorder %s18, 0
      %p60 = por %p58, %p59
      %p61 = scmp.ne.s32.totalorder %s49, %s50
      %p62 = scmp.eq.s32.totalorder %s19, 1
      %p63 = por %p61, %p62
      %p65 = scmp.ne.s32.totalorder %s50, %s64
      %p66 = scmp.eq.s32.totalorder %s19, 0
      %p67 = por %p65, %p66
      %s69 = sadd.s32 %s68, 1
      %p72 = scmp.eq.s32.totalorder %s13, 1
      %p73 = scmp.ne.s32.totalorder %s68, %s70
      %p74 = scmp.eq.s32.totalorder %s13, 0
      %p75 = por %p73, %p74
      %p76 = scmp.ne.s32.totalorder %s68, %s70
      %p77 = scmp.eq.s32.totalorder %s18, 1
      %p78 = por %p76, %p77
      %p79 = scmp.ne.s32.totalorder %s70, %s71
      %p80 = scmp.eq.s32.totalorder %s18, 0
      %p81 = por %p79, %p80
      %p82 = scmp.ne.s32.totalorder %s70, %s71
      %p83 = scmp.eq.s32.totalorder %s19, 1
      %p84 = por %p82, %p83
      %p86 = scmp.ne.s32.totalorder %s71, %s85
      %p87 = scmp.eq.s32.totalorder %s19, 0
      %p88 = por %p86, %p87
      %s89 = ssub.s32 %s13, %s20
      %p90 = scmp.eq.s32.totalorder %s89, 0
      %s92 = sadd.s32 %s91, 1
      %s93 = scalar_select %p90, %s91, %s92
      %p96 = pneg %p90
      %p97 = scmp.eq.s32.totalorder %s13, 1
      %p98 = por %p96, %p97
      %p99 = scmp.ne.s32.totalorder %s91, %s94
      %p100 = scmp.eq.s32.totalorder %s13, 0
      %p101 = por %p99, %p100
      %p102 = scmp.ne.s32.totalorder %s91, %s94
      %p103 = scmp.eq.s32.totalorder %s18, 1
      %p104 = por %p102, %p103
      %p105 = scmp.ne.s32.totalorder %s94, %s95
      %p106 = scmp.eq.s32.totalorder %s18, 0
      %p107 = por %p105, %p106
      %p108 = scmp.ne.s32.totalorder %s94, %s95
      %p109 = scmp.eq.s32.totalorder %s19, 1
      %p110 = por %p108, %p109
      %p112 = scmp.ne.s32.totalorder %s95, %s111
      %p113 = scmp.eq.s32.totalorder %s19, 0
      %p114 = por %p112, %p113
      %p115 = scmp.le.s32.totalorder 1, %s13
      %p116 = scmp.lt.s32.totalorder %s13, 3
      %p117 = pnand %p115, %p116
      %p118 = pneg %p117
      // Predicated region
      $region9: #{tpu_custom_call.1} parent=5 // pred_check
        _
      $region10: #{tpu_custom_call.1} parent=5 // pred_check_branch
        %120 = sbr.rel (%p117) target = $region12
      $region11: #{tpu_custom_call.1} parent=5 // pred_region
        %s121 = ssub.s32 %s13, 1
        // Predicated region
        $region13: #{tpu_custom_call.1} parent=11 // pred_check
          %p122 = pneg %p60
        $region14: #{tpu_custom_call.1} parent=11 // pred_check_branch
          %124 = sbr.rel (%p122) target = $region16
        $region15: #{tpu_custom_call.1} parent=11 // pred_region
          %s126 = ssub.s32 4352, 4352
          %127 = vsyncadd [#allocation3], %s126
          %s128 = sshll.u32 [#allocation2], 4
          %s129 = int_to_ptr.vmem [resolvable:$true] %s128
          %134 = dma.hbm_to_vmem [thread:$0]  %s1, 4352, %s129, [#allocation3], 128, 128, 8
        $region16: #{tpu_custom_call.1} parent=11 // pred_fallthru
          _
        // Predicated region
        $region17: #{tpu_custom_call.1} parent=11 // pred_check
          %p135 = pneg %p81
        $region18: #{tpu_custom_call.1} parent=11 // pred_check_branch
          %137 = sbr.rel (%p135) target = $region20
        $region19: #{tpu_custom_call.1} parent=11 // pred_region
          _
        $region20: #{tpu_custom_call.1} parent=11 // pred_fallthru
          _
      $region12: #{tpu_custom_call.1} parent=5 // pred_fallthru
        _
      %p138 = scmp.lt.s32.totalorder %s13, 2
      // Predicated region
      $region21: #{tpu_custom_call.1} parent=5 // pred_check
        %p139 = pneg %p138
      $region22: #{tpu_custom_call.1} parent=5 // pred_check_branch
        %141 = sbr.rel (%p139) target = $region24
      $region23: #{tpu_custom_call.1} parent=5 // pred_region
        // Predicated region
        $region25: #{tpu_custom_call.1} parent=23 // pred_check
          %p142 = pneg %p33
        $region26: #{tpu_custom_call.1} parent=23 // pred_check_branch
          %144 = sbr.rel (%p142) target = $region28
        $region27: #{tpu_custom_call.1} parent=23 // pred_region
          %s145 = smul.u32 4, %s13
          %p146 = scmp.lt.s32.totalorder %s145, 7
          %s147 = scalar_select %p146, %s145, 7
          %s148 = smul.addr %s147, 8
          %s149 = scalar_lea.vmem %s0, %s148
          %s150 = smul.u32 4, %s13
        $region28: #{tpu_custom_call.1} parent=23 // pred_fallthru
          _
      $region24: #{tpu_custom_call.1} parent=5 // pred_fallthru
        _
      %p151 = scmp.le.s32.totalorder 1, %s13
      %p152 = scmp.lt.s32.totalorder %s13, 3
      %p153 = pnand %p151, %p152
      %p154 = pneg %p153
      // Predicated region
      $region29: #{tpu_custom_call.1} parent=5 // pred_check
        _
      $region30: #{tpu_custom_call.1} parent=5 // pred_check_branch
        %156 = sbr.rel (%p153) target = $region32
      $region31: #{tpu_custom_call.1} parent=5 // pred_region
        %s157 = ssub.s32 %s13, 1
        // Predicated region
        $region33: #{tpu_custom_call.1} parent=31 // pred_check
          %p158 = pneg %p60
        $region34: #{tpu_custom_call.1} parent=31 // pred_check_branch
          %160 = sbr.rel (%p158) target = $region36
        $region35: #{tpu_custom_call.1} parent=31 // pred_region
          %161 = dma.done [#allocation3], 4352
        $region36: #{tpu_custom_call.1} parent=31 // pred_fallthru
          _
        %s162 = smul.u32 4, %s18
        %p163 = scmp.lt.s32.totalorder %s162, 7
        %s164 = scalar_select %p163, %s162, 7
        %s165 = smul.addr %s164, 8
        %s166 = scalar_lea.vmem %s0, %s165
        %p167 = pneg %p39
        %p168 = pneg %p36
        %p169 = pneg %p60
        %p170 = pneg %p57
        %p171 = pneg %p81
        %p172 = pneg %p78
        %p173 = pneg %p107
        %p174 = pneg %p104
        %s175 = sand.u32 %s94, 1
        %s176 = scalar_lea.sflag [#allocation4], %s175
        %s177 = sand.u32 %s94, 1
        %s178 = smul.addr %s177, 32
        %s179 = scalar_lea.vmem [#allocation5], %s178
        %s180 = smul.u32 4, %s18
        %p181 = scmp.lt.s32.totalorder %s180, 7
        %s182 = scalar_select %p181, %s180, 7
        %s183 = smul.addr %s182, 8
        %s184 = scalar_lea.vmem %s0, %s183
        %s185 = smul.u32 4, %s18
        %s186 = smul.u32 4, %s18
        %v187 = vld [vmem:[%s184] sm:$0xff]
        %v188 = vld [vmem:[%s184 + $0x8] sm:$0xff]
        %v189 = vld [vmem:[%s184 + $0x10] sm:$0xff]
        %v190 = vld [vmem:[%s184 + $0x18] sm:$0xff]
        %v191 = vld [vmem:[#allocation2] sm:$0xff]
        %v192 = vld [vmem:[#allocation2 + $0x8] sm:$0xff]
        %v193 = vld [vmem:[#allocation2 + $0x10] sm:$0xff]
        %v194 = vld [vmem:[#allocation2 + $0x18] sm:$0xff]
        %v195 = vld [vmem:[#allocation2 + $0x20] sm:$0xff]
        %v196 = vld [vmem:[#allocation2 + $0x28] sm:$0xff]
        %v197 = vld [vmem:[#allocation2 + $0x30] sm:$0xff]
        %v198 = vld [vmem:[#allocation2 + $0x38] sm:$0xff]
        %v199 = vld [vmem:[#allocation2 + $0x40] sm:$0xff]
        %v200 = vld [vmem:[#allocation2 + $0x48] sm:$0xff]
        %v201 = vld [vmem:[#allocation2 + $0x50] sm:$0xff]
        %v202 = vld [vmem:[#allocation2 + $0x58] sm:$0xff]
        %v203 = vld [vmem:[#allocation2 + $0x60] sm:$0xff]
        %v204 = vld [vmem:[#allocation2 + $0x68] sm:$0xff]
        %v205 = vld [vmem:[#allocation2 + $0x70] sm:$0xff]
        %v206 = vld [vmem:[#allocation2 + $0x78] sm:$0xff]
        %v207 = vld [vmem:[#allocation2 + $0x80] sm:$0xff]
        %v208 = vld [vmem:[#allocation2 + $0x88] sm:$0xff]
        %v209 = vld [vmem:[#allocation2 + $0x90] sm:$0xff]
        %v210 = vld [vmem:[#allocation2 + $0x98] sm:$0xff]
        %v211 = vld [vmem:[#allocation2 + $0xa0] sm:$0xff]
        %v212 = vld [vmem:[#allocation2 + $0xa8] sm:$0xff]
        %v213 = vld [vmem:[#allocation2 + $0xb0] sm:$0xff]
        %v214 = vld [vmem:[#allocation2 + $0xb8] sm:$0xff]
        %v215 = vld [vmem:[#allocation2 + $0xc0] sm:$0xff]
        %v216 = vld [vmem:[#allocation2 + $0xc8] sm:$0xff]
        %v217 = vld [vmem:[#allocation2 + $0xd0] sm:$0xff]
        %v218 = vld [vmem:[#allocation2 + $0xd8] sm:$0xff]
        %v219 = vld [vmem:[#allocation2 + $0xe0] sm:$0xff]
        %v220 = vld [vmem:[#allocation2 + $0xe8] sm:$0xff]
        %v221 = vld [vmem:[#allocation2 + $0xf0] sm:$0xff]
        %v222 = vld [vmem:[#allocation2 + $0xf8] sm:$0xff]
        %v223 = vld [vmem:[#allocation2 + $0x100] sm:$0xff]
        %v224 = vld [vmem:[#allocation2 + $0x108] sm:$0xff]
        %v225 = vld [vmem:[%s2] sm:$0xff]
        %v226 = vlaneseq
        %v227 = vshrl.u32 %v226, 7
        %v228 = vsub.s32 0, %v227
        %v229 = vrot.slane %v225, %v228
        %vm230 = vcmask 130048
        %v232 = vsel %vm230, %v187, 0
        %v235 = vsel %vm230, %v188, 0
        %v238 = vsel %vm230, %v189, 0
        %v241 = vsel %vm230, %v190, 0
        %243 = vmatprep.subr.mxu0 0.0
        %244 = vmatpush1.msra.mxu0 %v191
        %245 = vmatprep.subr.mxu0 0.0
        %246 = vmatpush1.msra.mxu0 %v192
        %247 = vmatprep.subr.mxu0 0.0
        %248 = vmatpush1.msra.mxu0 0.0
        %249 = vmatprep.subr.mxu0 0.0
        %250 = vmatpush1.msra.mxu0 0.0
        %251 = vmatprep.subr.mxu0 0.0
        %252 = vmatpush1.msra.mxu0 0.0
        %253 = vmatprep.subr.mxu0 0.0
        %254 = vmatpush1.msra.mxu0 0.0
        %255 = vmatprep.subr.mxu0 0.0
        %256 = vmatpush1.msra.mxu0 0.0
        %257 = vmatprep.subr.mxu0 0.0
        %258 = vmatpush1.msra.mxu0 0.0
        %259 = vmatprep.subr.mxu0 0.0
        %260 = vmatpush1.msra.mxu0 0.0
        %261 = vmatprep.subr.mxu0 0.0
        %262 = vmatpush1.msra.mxu0 0.0
        %263 = vmatprep.subr.mxu0 0.0
        %264 = vmatpush1.msra.mxu0 0.0
        %265 = vmatprep.subr.mxu0 0.0
        %266 = vmatpush1.msra.mxu0 0.0
        %267 = vmatprep.subr.mxu0 0.0
        %268 = vmatpush1.msra.mxu0 0.0
        %269 = vmatprep.subr.mxu0 0.0
        %270 = vmatpush1.msra.mxu0 0.0
        %271 = vmatprep.subr.mxu0 0.0
        %272 = vmatpush1.msra.mxu0 0.0
        %273 = vmatprep.subr.mxu0 0.0
        %274 = vmatpush1.msra.mxu0 0.0
        %275 = vmatprep.subr.mxu0 0.0
        %276 = vmatpush1.msra.mxu0 0.0
        %277 = vmatprep.subr.mxu0 0.0
        %278 = vmatpush1.msra.mxu0 0.0
        %279 = vmatprep.subr.mxu0 0.0
        %280 = vmatpush1.msra.mxu0 0.0
        %281 = vmatprep.subr.mxu0 0.0
        %282 = vmatpush1.msra.mxu0 0.0
        %283 = vmatprep.subr.mxu0 0.0
        %284 = vmatpush1.msra.mxu0 0.0
        %285 = vmatprep.subr.mxu0 0.0
        %286 = vmatpush1.msra.mxu0 0.0
        %287 = vmatprep.subr.mxu0 0.0
        %288 = vmatpush1.msra.mxu0 0.0
        %289 = vmatprep.subr.mxu0 0.0
        %290 = vmatpush1.msra.mxu0 0.0
        %291 = vmatprep.subr.mxu0 0.0
        %292 = vmatpush1.msra.mxu0 0.0
        %293 = vmatprep.subr.mxu0 0.0
        %294 = vmatpush1.msra.mxu0 0.0
        %295 = vmatprep.subr.mxu0 0.0
        %296 = vmatpush1.msra.mxu0 0.0
        %297 = vmatprep.subr.mxu0 0.0
        %298 = vmatpush1.msra.mxu0 0.0
        %299 = vmatprep.subr.mxu0 0.0
        %300 = vmatpush1.msra.mxu0 0.0
        %301 = vmatprep.subr.mxu0 0.0
        %302 = vmatpush1.msra.mxu0 0.0
        %303 = vmatprep.subr.mxu0 0.0
        %304 = vmatpush1.msra.mxu0 0.0
        %305 = vmatprep.subr.mxu0 0.0
        %306 = vmatpush1.msra.mxu0 0.0
        %307 = vmatprep.mubr.f32.mxu0 0.0
        %308 = vmatmul.mubr.f32.gmra.mrb[0].mxu0 %v232
        %v309 = vpop.f32.mrb[0].mxu0
        %v310 = vadd.f32 %v229, %v309
        %v311 = vpop.f32.mrb[0].mxu0
        %312 = vmatprep.mubr.f32.mxu0 0.0
        %313 = vmatmul.mubr.f32.gmra.mrb[0].mxu0 %v235
        %v314 = vpop.f32.mrb[0].mxu0
        %v315 = vadd.f32 %v229, %v314
        %v316 = vpop.f32.mrb[0].mxu0
        %317 = vmatprep.mubr.f32.mxu0 0.0
        %318 = vmatmul.mubr.f32.gmra.mrb[0].mxu0 %v238
        %v319 = vpop.f32.mrb[0].mxu0
        %v320 = vadd.f32 %v229, %v319
        %v321 = vpop.f32.mrb[0].mxu0
        %322 = vmatprep.mubr.f32.mxu0 0.0
        %323 = vmatmul.mubr.f32.gmra.mrb[0].mxu0 %v241
        %v324 = vpop.f32.mrb[0].mxu0
        %v325 = vadd.f32 %v229, %v324
        %v326 = vpop.f32.mrb[0].mxu0
        %327 = vdwg.mxu0
        %v328 = vtanh.pop %v310
        %v329 = vtanh.pop %v315
        %v330 = vtanh.pop %v320
        %v331 = vtanh.pop %v325
        %v332 = vlaneseq
        %v333 = vshrl.u32 %v332, 7
        %v334 = vsub.s32 1, %v333
        %v335 = vrot.slane %v225, %v334
        %336 = vmatprep.subr.mxu0 0.0
        %337 = vmatpush1.msra.mxu0 %v193
        %338 = vmatprep.subr.mxu0 0.0
        %339 = vmatpush1.msra.mxu0 %v194
        %340 = vmatprep.subr.mxu0 0.0
        %341 = vmatpush1.msra.mxu0 %v195
        %342 = vmatprep.subr.mxu0 0.0
        %343 = vmatpush1.msra.mxu0 %v196
        %344 = vmatprep.subr.mxu0 0.0
        %345 = vmatpush1.msra.mxu0 %v197
        %346 = vmatprep.subr.mxu0 0.0
        %347 = vmatpush1.msra.mxu0 %v198
        %348 = vmatprep.subr.mxu0 0.0
        %349 = vmatpush1.msra.mxu0 %v199
        %350 = vmatprep.subr.mxu0 0.0
        %351 = vmatpush1.msra.mxu0 %v200
        %352 = vmatprep.subr.mxu0 0.0
        %353 = vmatpush1.msra.mxu0 %v201
        %354 = vmatprep.subr.mxu0 0.0
        %355 = vmatpush1.msra.mxu0 %v202
        %356 = vmatprep.subr.mxu0 0.0
        %357 = vmatpush1.msra.mxu0 %v203
        %358 = vmatprep.subr.mxu0 0.0
        %359 = vmatpush1.msra.mxu0 %v204
        %360 = vmatprep.subr.mxu0 0.0
        %361 = vmatpush1.msra.mxu0 %v205
        %362 = vmatprep.subr.mxu0 0.0
        %363 = vmatpush1.msra.mxu0 %v206
        %364 = vmatprep.subr.mxu0 0.0
        %365 = vmatpush1.msra.mxu0 %v207
        %366 = vmatprep.subr.mxu0 0.0
        %367 = vmatpush1.msra.mxu0 %v208
        %368 = vmatprep.subr.mxu0 0.0
        %369 = vmatpush1.msra.mxu0 0.0
        %370 = vmatprep.subr.mxu0 0.0
        %371 = vmatpush1.msra.mxu0 0.0
        %372 = vmatprep.subr.mxu0 0.0
        %373 = vmatpush1.msra.mxu0 0.0
        %374 = vmatprep.subr.mxu0 0.0
        %375 = vmatpush1.msra.mxu0 0.0
        %376 = vmatprep.subr.mxu0 0.0
        %377 = vmatpush1.msra.mxu0 0.0
        %378 = vmatprep.subr.mxu0 0.0
        %379 = vmatpush1.msra.mxu0 0.0
        %380 = vmatprep.subr.mxu0 0.0
        %381 = vmatpush1.msra.mxu0 0.0
        %382 = vmatprep.subr.mxu0 0.0
        %383 = vmatpush1.msra.mxu0 0.0
        %384 = vmatprep.subr.mxu0 0.0
        %385 = vmatpush1.msra.mxu0 0.0
        %386 = vmatprep.subr.mxu0 0.0
        %387 = vmatpush1.msra.mxu0 0.0
        %388 = vmatprep.subr.mxu0 0.0
        %389 = vmatpush1.msra.mxu0 0.0
        %390 = vmatprep.subr.mxu0 0.0
        %391 = vmatpush1.msra.mxu0 0.0
        %392 = vmatprep.subr.mxu0 0.0
        %393 = vmatpush1.msra.mxu0 0.0
        %394 = vmatprep.subr.mxu0 0.0
        %395 = vmatpush1.msra.mxu0 0.0
        %396 = vmatprep.subr.mxu0 0.0
        %397 = vmatpush1.msra.mxu0 0.0
        %398 = vmatprep.subr.mxu0 0.0
        %399 = vmatpush1.msra.mxu0 0.0
        %400 = vmatprep.mubr.f32.mxu0 0.0
        %401 = vmatmul.mubr.f32.gmra.mrb[0].mxu0 %v328
        %v402 = vpop.f32.mrb[0].mxu0
        %v403 = vadd.f32 %v335, %v402
        %v404 = vpop.f32.mrb[0].mxu0
        %405 = vmatprep.mubr.f32.mxu0 0.0
        %406 = vmatmul.mubr.f32.gmra.mrb[0].mxu0 %v329
        %v407 = vpop.f32.mrb[0].mxu0
        %v408 = vadd.f32 %v335, %v407
        %v409 = vpop.f32.mrb[0].mxu0
        %410 = vmatprep.mubr.f32.mxu0 0.0
        %411 = vmatmul.mubr.f32.gmra.mrb[0].mxu0 %v330
        %v412 = vpop.f32.mrb[0].mxu0
        %v413 = vadd.f32 %v335, %v412
        %v414 = vpop.f32.mrb[0].mxu0
        %415 = vmatprep.mubr.f32.mxu0 0.0
        %416 = vmatmul.mubr.f32.gmra.mrb[0].mxu0 %v331
        %v417 = vpop.f32.mrb[0].mxu0
        %v418 = vadd.f32 %v335, %v417
        %v419 = vpop.f32.mrb[0].mxu0
        %420 = vdwg.mxu0
        %v421 = vtanh.pop %v403
        %v422 = vtanh.pop %v408
        %v423 = vtanh.pop %v413
        %v424 = vtanh.pop %v418
        %v425 = vlaneseq
        %v426 = vshrl.u32 %v425, 7
        %v427 = vsub.s32 2, %v426
        %v428 = vrot.slane %v225, %v427
        %429 = vmatprep.subr.mxu0 0.0
        %430 = vmatpush1.msra.mxu0 %v209
        %431 = vmatprep.subr.mxu0 0.0
        %432 = vmatpush1.msra.mxu0 %v210
        %433 = vmatprep.subr.mxu0 0.0
        %434 = vmatpush1.msra.mxu0 %v211
        %435 = vmatprep.subr.mxu0 0.0
        %436 = vmatpush1.msra.mxu0 %v212
        %437 = vmatprep.subr.mxu0 0.0
        %438 = vmatpush1.msra.mxu0 %v213
        %439 = vmatprep.subr.mxu0 0.0
        %440 = vmatpush1.msra.mxu0 %v214
        %441 = vmatprep.subr.mxu0 0.0
        %442 = vmatpush1.msra.mxu0 %v215
        %443 = vmatprep.subr.mxu0 0.0
        %444 = vmatpush1.msra.mxu0 %v216
        %445 = vmatprep.subr.mxu0 0.0
        %446 = vmatpush1.msra.mxu0 %v217
        %447 = vmatprep.subr.mxu0 0.0
        %448 = vmatpush1.msra.mxu0 %v218
        %449 = vmatprep.subr.mxu0 0.0
        %450 = vmatpush1.msra.mxu0 %v219
        %451 = vmatprep.subr.mxu0 0.0
        %452 = vmatpush1.msra.mxu0 %v220
        %453 = vmatprep.subr.mxu0 0.0
        %454 = vmatpush1.msra.mxu0 %v221
        %455 = vmatprep.subr.mxu0 0.0
        %456 = vmatpush1.msra.mxu0 %v222
        %457 = vmatprep.subr.mxu0 0.0
        %458 = vmatpush1.msra.mxu0 %v223
        %459 = vmatprep.subr.mxu0 0.0
        %460 = vmatpush1.msra.mxu0 %v224
        %461 = vmatprep.subr.mxu0 0.0
        %462 = vmatpush1.msra.mxu0 0.0
        %463 = vmatprep.subr.mxu0 0.0
        %464 = vmatpush1.msra.mxu0 0.0
        %465 = vmatprep.subr.mxu0 0.0
        %466 = vmatpush1.msra.mxu0 0.0
        %467 = vmatprep.subr.mxu0 0.0
        %468 = vmatpush1.msra.mxu0 0.0
        %469 = vmatprep.subr.mxu0 0.0
        %470 = vmatpush1.msra.mxu0 0.0
        %471 = vmatprep.subr.mxu0 0.0
        %472 = vmatpush1.msra.mxu0 0.0
        %473 = vmatprep.subr.mxu0 0.0
        %474 = vmatpush1.msra.mxu0 0.0
        %475 = vmatprep.subr.mxu0 0.0
        %476 = vmatpush1.msra.mxu0 0.0
        %477 = vmatprep.subr.mxu0 0.0
        %478 = vmatpush1.msra.mxu0 0.0
        %479 = vmatprep.subr.mxu0 0.0
        %480 = vmatpush1.msra.mxu0 0.0
        %481 = vmatprep.subr.mxu0 0.0
        %482 = vmatpush1.msra.mxu0 0.0
        %483 = vmatprep.subr.mxu0 0.0
        %484 = vmatpush1.msra.mxu0 0.0
        %485 = vmatprep.subr.mxu0 0.0
        %486 = vmatpush1.msra.mxu0 0.0
        %487 = vmatprep.subr.mxu0 0.0
        %488 = vmatpush1.msra.mxu0 0.0
        %489 = vmatprep.subr.mxu0 0.0
        %490 = vmatpush1.msra.mxu0 0.0
        %491 = vmatprep.subr.mxu0 0.0
        %492 = vmatpush1.msra.mxu0 0.0
        %493 = vmatprep.mubr.f32.mxu0 0.0
        %494 = vmatmul.mubr.f32.gmra.mrb[0].mxu0 %v421
        %v495 = vpop.f32.mrb[0].mxu0
        %v496 = vadd.f32 %v428, %v495
        %v497 = vpop.f32.mrb[0].mxu0
        %498 = vmatprep.mubr.f32.mxu0 0.0
        %499 = vmatmul.mubr.f32.gmra.mrb[0].mxu0 %v422
        %v500 = vpop.f32.mrb[0].mxu0
        %v501 = vadd.f32 %v428, %v500
        %v502 = vpop.f32.mrb[0].mxu0
        %503 = vmatprep.mubr.f32.mxu0 0.0
        %504 = vmatmul.mubr.f32.gmra.mrb[0].mxu0 %v423
        %v505 = vpop.f32.mrb[0].mxu0
        %v506 = vadd.f32 %v428, %v505
        %v507 = vpop.f32.mrb[0].mxu0
        %508 = vmatprep.mubr.f32.mxu0 0.0
        %509 = vmatmul.mubr.f32.gmra.mrb[0].mxu0 %v424
        %v510 = vpop.f32.mrb[0].mxu0
        %v511 = vadd.f32 %v428, %v510
        %v512 = vpop.f32.mrb[0].mxu0
        %513 = vdwg.mxu0
        %514 = vmax.xlane.f32.xlu0 %v496
        %v515 = vpop.xlane.xlu0 %514
        %516 = vmax.xlane.f32.xlu0 %v501
        %v517 = vpop.xlane.xlu0 %516
        %518 = vmax.xlane.f32.xlu0 %v506
        %v519 = vpop.xlane.xlu0 %518
        %520 = vmax.xlane.f32.xlu0 %v511
        %v521 = vpop.xlane.xlu0 %520
        %v522 = vsub.f32 %v496, %v515
        %v523 = vsub.f32 %v501, %v517
        %v524 = vsub.f32 %v506, %v519
        %v525 = vsub.f32 %v511, %v521
        %v526 = vmul.f32 %v522, 1.442695
        %v527 = vpow.pop %v526
        %v528 = vmul.f32 %v523, 1.442695
        %v529 = vpow.pop %v528
        %v530 = vmul.f32 %v524, 1.442695
        %v531 = vpow.pop %v530
        %v532 = vmul.f32 %v525, 1.442695
        %v533 = vpow.pop %v532
        %534 = vadd.xlane.f32.xlu0 %v527
        %v535 = vpop.xlane.xlu0 %534
        %536 = vadd.xlane.f32.xlu0 %v529
        %v537 = vpop.xlane.xlu0 %536
        %538 = vadd.xlane.f32.xlu0 %v531
        %v539 = vpop.xlane.xlu0 %538
        %540 = vadd.xlane.f32.xlu0 %v533
        %v541 = vpop.xlane.xlu0 %540
        %v542 = vrcp.pop %v535
        %v543 = vrcp.pop %v537
        %v544 = vrcp.pop %v539
        %v545 = vrcp.pop %v541
        %v546 = vmul.f32 %v527, %v542
        %v547 = vmul.f32 %v529, %v543
        %v548 = vmul.f32 %v531, %v544
        %v549 = vmul.f32 %v533, %v545
        %550 = vst [vmem:[%s179] sm:$0xff] %v546
        %551 = vst [vmem:[%s179 + $0x8] sm:$0xff] %v547
        %552 = vst [vmem:[%s179 + $0x10] sm:$0xff] %v548
        %553 = vst [vmem:[%s179 + $0x18] sm:$0xff] %v549
        %s554 = sand.u32 %s94, 1
        %s555 = scalar_lea.sflag [#allocation4], %s554
        %s556 = sand.u32 %s94, 1
        %s557 = smul.addr %s556, 32
        %s558 = scalar_lea.vmem [#allocation5], %s557
        // Predicated region
        $region37: #{tpu_custom_call.1} parent=31 // pred_check
          %p559 = pneg %p104
        $region38: #{tpu_custom_call.1} parent=31 // pred_check_branch
          %561 = sbr.rel (%p559) target = $region40
        $region39: #{tpu_custom_call.1} parent=31 // pred_region
          %s562 = smul.u32 4, %s18
          %s564 = ssub.s32 512, 512
          %565 = vsyncadd %s555, %s564
          %s566 = smul.addr %s562, 128
          %s567 = scalar_lea.hbm %s3, %s566
          %s568 = sshll.u32 %s558, 4
          %s569 = int_to_ptr.vmem [resolvable:$true] %s568
          %574 = dma.vmem_to_hbm [thread:$0]  %s569, 512, %s567, %s555, 128, 128, 8
        $region40: #{tpu_custom_call.1} parent=31 // pred_fallthru
          _
      $region32: #{tpu_custom_call.1} parent=5 // pred_fallthru
        _
      %p575 = scmp.le.s32.totalorder 2, %s13
      // Predicated region
      $region41: #{tpu_custom_call.1} parent=5 // pred_check
        %p576 = pneg %p575
      $region42: #{tpu_custom_call.1} parent=5 // pred_check_branch
        %578 = sbr.rel (%p576) target = $region44
      $region43: #{tpu_custom_call.1} parent=5 // pred_region
        %s579 = ssub.s32 %s13, 2
        // Predicated region
        $region45: #{tpu_custom_call.1} parent=43 // pred_check
          %p580 = pneg %p110
        $region46: #{tpu_custom_call.1} parent=43 // pred_check_branch
          %582 = sbr.rel (%p580) target = $region48
        $region47: #{tpu_custom_call.1} parent=43 // pred_region
          %s583 = sand.u32 %s95, 1
          %s584 = scalar_lea.sflag [#allocation4], %s583
          %s585 = sand.u32 %s95, 1
          %s586 = smul.addr %s585, 32
          %s587 = scalar_lea.vmem [#allocation5], %s586
          %588 = dma.done %s584, 512
        $region48: #{tpu_custom_call.1} parent=43 // pred_fallthru
          _
      $region44: #{tpu_custom_call.1} parent=5 // pred_fallthru
        _
    $region6: #{tpu_custom_call.1} parent=1 // loop_footer
      %s17 = sadd.s32 1, %s13
    $region7: #{tpu_custom_call.1} parent=1 // loop_footer_branch
      %12 = sbr.rel target = $region3
    $region8: #{tpu_custom_call.1} parent=1 // loop_exit
      _
    %589 = vsyncpa [#allocation3], 1
    %s590 = scalar_lea.sflag [#allocation3], 1
    %591 = vsyncpa %s590, 1
    %592 = vsyncpa [#allocation4], 1
    %s593 = scalar_lea.sflag [#allocation4], 1
    %594 = vsyncpa %s593, 1

</llo_original>
